<compile_context>
chip_gen: v7x
topology: tpu7x:2x2x1
jax: 0.10.0
libtpu: 0.0.40
codegen_flags: <defaults>
</compile_context>

<pallas_src>
import functools

import jax
import jax.numpy as jnp
from jax.experimental import pallas as pl
from jax.experimental.pallas import tpu as pltpu


def _leaky_relu(v, slope=0.01):
    # F.leaky_relu default negative_slope = 0.01.
    return jnp.where(v > 0, v, slope * v)


def _round_up(n, m):
    return ((n + m - 1) // m) * m


def mlp_attn_kernel(x_ref, wa_ref, ba_ref,
                    w1_ref, b1_ref, w2_ref, b2_ref,
                    w3_ref, b3_ref, w4_ref, b4_ref,
                    out_ref, *, compute_dtype):
    cdt = compute_dtype
    x = x_ref[...].astype(jnp.float32)
    D = x.shape[-1]

    # --- attention: softmax(x @ Wa + ba, axis=-1); softmax math in f32 ---
    logits = jnp.dot(x.astype(cdt), wa_ref[...].astype(cdt),
                     preferred_element_type=jnp.float32) + ba_ref[...]
    m = jnp.max(logits, axis=-1, keepdims=True)
    e = jnp.exp(logits - m)
    # EUP approx reciprocal: normalization is effectively free.
    attn = e * pl.reciprocal(jnp.sum(e, axis=-1, keepdims=True), approx=True)
    h = x * attn

    # --- MLP trunk (nn.Dropout(0.3) is identity in eval mode) ---
    # TODO(synk): training-mode dropout not implemented (eval semantics only).
    h = _leaky_relu(jnp.dot(h.astype(cdt), w1_ref[...],
                            preferred_element_type=jnp.float32) + b1_ref[...])
    h = _leaky_relu(jnp.dot(h.astype(cdt), w2_ref[...],
                            preferred_element_type=jnp.float32) + b2_ref[...])
    h = _leaky_relu(jnp.dot(h.astype(cdt), w3_ref[...],
                            preferred_element_type=jnp.float32) + b3_ref[...])

    # fc4 (64 -> 1): VPU multiply + lane reduce (w4 kept f32 for the VPU path).
    y = jnp.sum(h * w4_ref[...], axis=-1, keepdims=True) + b4_ref[...]  # (TB, 1)

    # Pack [attn | out] into one lane-dense 128-wide slab:
    #   lanes 0..D-1 = attn  (lane-aligned wide store, no shift),
    #   lane  D      = out   (single masked lane).
    # Remaining lanes are don't-care; the wrapper slices them away.
    out_ref[:, 0:D] = attn.astype(out_ref.dtype)
    out_ref[:, D:D + 1] = y.astype(out_ref.dtype)


def mlp_with_attention(x, params, *, tile_b=512, compute_dtype=jnp.float32):
    """x: [B, D] float32. params: dict of (w, b), w as [in, out], b as [1, out].

    compute_dtype: dtype fed to the MXU (jnp.bfloat16 recommended on
    v6e/v7x); accumulation and all elementwise math stay in float32.
    """
    B, D = x.shape
    wa, ba = params["attn"]
    w1, b1 = params["fc1"]
    w2, b2 = params["fc2"]
    w3, b3 = params["fc3"]
    w4, b4 = params["fc4"]
    H1, H2, H3 = w1.shape[1], w2.shape[1], w3.shape[1]

    # Pre-cast MXU weights in the wrapper: halves weight DMA bytes when bf16
    # and removes per-tile in-kernel casts.  wa is cast in-kernel (cheap, it
    # shares the cast with x); biases and w4 (VPU path) stay f32.
    w1c = w1.astype(compute_dtype)
    w2c = w2.astype(compute_dtype)
    w3c = w3.astype(compute_dtype)
    w4_row = w4.reshape(1, H3)  # (1, H3) row for the VPU multiply + reduce.

    # Batch tiling: pad batch to a multiple of the tile, grid over batch tiles.
    TB = min(tile_b, _round_up(B, 8))
    Bp = _round_up(B, TB)
    if Bp != B:
        x = jnp.pad(x, ((0, Bp - B), (0, 0)))

    out_w = _round_up(D + 1, 128)          # lane-dense packed output width
    grid = (pl.cdiv(Bp, TB),)

    def _const(a):
        # Full-array block, constant index map -> DMA'd once, VMEM-resident.
        return pl.BlockSpec(a.shape, lambda i: (0,) * a.ndim)

    in_specs = [
        pl.BlockSpec((TB, D), lambda i: (i, 0)),   # x, tiled over batch
        _const(wa), _const(ba),
        _const(w1c), _const(b1),
        _const(w2c), _const(b2),
        _const(w3c), _const(b3),
        _const(w4_row), _const(b4),
    ]
    out_spec = pl.BlockSpec((TB, out_w), lambda i: (i, 0))

    flops = 2 * Bp * (D * D + D * H1 + H1 * H2 + H2 * H3 + H3)
    bytes_accessed = (
        x.size * x.dtype.itemsize
        + sum(int(a.size) * a.dtype.itemsize
              for a in (wa, ba, w1c, b1, w2c, b2, w3c, b3, w4_row, b4))
        + Bp * out_w * x.dtype.itemsize)
    cost = pl.CostEstimate(flops=flops,
                           transcendentals=Bp * (D + 1),
                           bytes_accessed=bytes_accessed)

    slab = pl.pallas_call(
        functools.partial(mlp_attn_kernel, compute_dtype=compute_dtype),
        out_shape=jax.ShapeDtypeStruct((Bp, out_w), x.dtype),
        grid=grid,
        in_specs=in_specs,
        out_specs=out_spec,
        compiler_params=pltpu.CompilerParams(
            dimension_semantics=("parallel",),      # megacore split on v7x
            vmem_limit_bytes=32 * 1024 * 1024),     # safe on 64 MiB v7x VMEM
        cost_estimate=cost,
    )(x, wa, ba, w1c, b1, w2c, b2, w3c, b3, w4_row, b4)

    attn = slab[:B, 0:D]
    out = slab[:B, D:D + 1]
    return out, attn


def _init_linear(key, in_dim, out_dim):
    # Deterministic init mimicking PyTorch nn.Linear default:
    # U(-1/sqrt(in_dim), 1/sqrt(in_dim)).  Weight stored pre-transposed as
    # [in, out]; bias as [1, out] for lane broadcasting.
    kw, kb = jax.random.split(key)
    bound = 1.0 / jnp.sqrt(jnp.float32(in_dim))
    w = jax.random.uniform(kw, (in_dim, out_dim), jnp.float32, -bound, bound)
    b = jax.random.uniform(kb, (1, out_dim), jnp.float32, -bound, bound)
    return w, b


if __name__ == "__main__":
    key = jax.random.PRNGKey(0)
    k_x, k_a, k1, k2, k3, k4 = jax.random.split(key, 6)

    B, D = 8, 32  # small shapes: batch=8, input_dim=32
    x = jax.random.normal(k_x, (B, D), jnp.float32)

    params = {
        "attn": _init_linear(k_a, D, D),
        "fc1": _init_linear(k1, D, 256),
        "fc2": _init_linear(k2, 256, 128),
        "fc3": _init_linear(k3, 128, 64),
        "fc4": _init_linear(k4, 64, 1),
    }

    out, attn = mlp_with_attention(x, params)
    jax.block_until_ready((out, attn))

    # Pure-JAX reference (same math, eval-mode dropout).
    def ref(xv):
        wa, ba = params["attn"]
        a = jax.nn.softmax(xv @ wa + ba, axis=-1)
        h = xv * a
        lr = lambda v: jnp.where(v > 0, v, 0.01 * v)
        h = lr(h @ params["fc1"][0] + params["fc1"][1])
        h = lr(h @ params["fc2"][0] + params["fc2"][1])
        h = lr(h @ params["fc3"][0] + params["fc3"][1])
        return h @ params["fc4"][0] + params["fc4"][1], a

    out_r, attn_r = ref(x)
    # approx EUP reciprocal in the softmax -> slightly looser than exact-f32.
    assert jnp.allclose(out, out_r, atol=2e-3, rtol=2e-3)
    assert jnp.allclose(attn, attn_r, atol=2e-3, rtol=2e-3)

    # bf16 MXU-input fast path (recommended on v6e/v7x); elementwise math
    # stays f32, so only matmul rounding differs.
    out_bf, attn_bf = mlp_with_attention(x, params, compute_dtype=jnp.bfloat16)
    jax.block_until_ready((out_bf, attn_bf))
    assert jnp.allclose(out_bf, out_r, atol=1e-1, rtol=1e-1)
    assert jnp.allclose(attn_bf, attn_r, atol=1e-1, rtol=1e-1)

    print("KERNEL_OK")
</pallas_src>

<mosaic_0001>
module attributes {stable_mosaic.version = 11 : i64} {
  func.func @mlp_attn_kernel(%arg0: i32, %arg1: memref<8x32xf32, #tpu.memory_space<vmem>>, %arg2: memref<32x32xf32, #tpu.memory_space<vmem>>, %arg3: memref<1x32xf32, #tpu.memory_space<vmem>>, %arg4: memref<32x256xf32, #tpu.memory_space<vmem>>, %arg5: memref<1x256xf32, #tpu.memory_space<vmem>>, %arg6: memref<256x128xf32, #tpu.memory_space<vmem>>, %arg7: memref<1x128xf32, #tpu.memory_space<vmem>>, %arg8: memref<128x64xf32, #tpu.memory_space<vmem>>, %arg9: memref<1x64xf32, #tpu.memory_space<vmem>>, %arg10: memref<1x64xf32, #tpu.memory_space<vmem>>, %arg11: memref<1x1xf32, #tpu.memory_space<vmem>>, %arg12: memref<8x128xf32, #tpu.memory_space<vmem>>) attributes {dimension_semantics = [#tpu.dimension_semantics<parallel>], iteration_bounds = array<i64: 1>, scalar_prefetch = 0 : i64, scratch_operands = 0 : i64, tpu.core_type = #tpu.core_type<tc>, window_params = [{transform_indices = @transform_0, window_bounds = array<i64: 8, 32>}, {pipeline_mode = #tpu.pipeline_mode<synchronous>, transform_indices = @transform_1, window_bounds = array<i64: 32, 32>}, {pipeline_mode = #tpu.pipeline_mode<synchronous>, transform_indices = @transform_2, window_bounds = array<i64: 1, 32>}, {pipeline_mode = #tpu.pipeline_mode<synchronous>, transform_indices = @transform_3, window_bounds = array<i64: 32, 256>}, {pipeline_mode = #tpu.pipeline_mode<synchronous>, transform_indices = @transform_4, window_bounds = array<i64: 1, 256>}, {pipeline_mode = #tpu.pipeline_mode<synchronous>, transform_indices = @transform_5, window_bounds = array<i64: 256, 128>}, {pipeline_mode = #tpu.pipeline_mode<synchronous>, transform_indices = @transform_6, window_bounds = array<i64: 1, 128>}, {pipeline_mode = #tpu.pipeline_mode<synchronous>, transform_indices = @transform_7, window_bounds = array<i64: 128, 64>}, {pipeline_mode = #tpu.pipeline_mode<synchronous>, transform_indices = @transform_8, window_bounds = array<i64: 1, 64>}, {pipeline_mode = #tpu.pipeline_mode<synchronous>, transform_indices = @transform_9, window_bounds = array<i64: 1, 64>}, {pipeline_mode = #tpu.pipeline_mode<synchronous>, transform_indices = @transform_10, window_bounds = array<i64: 1, 1>}, {transform_indices = @transform_11, window_bounds = array<i64: 8, 128>}]} {
    %c0 = arith.constant 0 : index
    %c0_0 = arith.constant 0 : index
    %0 = vector.load %arg1[%c0, %c0_0] : memref<8x32xf32, #tpu.memory_space<vmem>>, vector<8x32xf32>
    %c0_1 = arith.constant 0 : index
    %c0_2 = arith.constant 0 : index
    %1 = vector.load %arg2[%c0_1, %c0_2] : memref<32x32xf32, #tpu.memory_space<vmem>>, vector<32x32xf32>
    %cst = arith.constant dense<0.000000e+00> : vector<8x32xf32>
    %2 = tpu.matmul %0, %1, %cst {dimension_numbers = #tpu.dot_dimension_numbers<[1], [0], [0], [1], [0, 0, 1, 1], [], []>} : vector<8x32xf32>, vector<32x32xf32>, vector<8x32xf32> -> vector<8x32xf32>
    %c0_3 = arith.constant 0 : index
    %c0_4 = arith.constant 0 : index
    %3 = vector.load %arg3[%c0_3, %c0_4] : memref<1x32xf32, #tpu.memory_space<vmem>>, vector<1x32xf32>
    %4 = vector.broadcast %3 : vector<1x32xf32> to vector<8x32xf32>
    %5 = arith.addf %2, %4 : vector<8x32xf32>
    %cst_5 = arith.constant dense<0xFF800000> : vector<8xf32>
    %6 = vector.multi_reduction <maximumf>, %5, %cst_5 [1] : vector<8x32xf32> to vector<8xf32>
    %7 = vector.shape_cast %6 : vector<8xf32> to vector<8x1xf32>
    %8 = vector.broadcast %7 : vector<8x1xf32> to vector<8x32xf32>
    %9 = arith.subf %5, %8 : vector<8x32xf32>
    %10 = math.exp %9 : vector<8x32xf32>
    %cst_6 = arith.constant dense<0.000000e+00> : vector<8xf32>
    %11 = vector.multi_reduction <add>, %10, %cst_6 [1] : vector<8x32xf32> to vector<8xf32>
    %12 = vector.shape_cast %11 : vector<8xf32> to vector<8x1xf32>
    %13 = tpu.reciprocal %12 {approx = true} : vector<8x1xf32> -> vector<8x1xf32>
    %14 = vector.broadcast %13 : vector<8x1xf32> to vector<8x32xf32>
    %15 = arith.mulf %10, %14 : vector<8x32xf32>
    %16 = arith.mulf %0, %15 : vector<8x32xf32>
    %c0_7 = arith.constant 0 : index
    %c0_8 = arith.constant 0 : index
    %17 = vector.load %arg4[%c0_7, %c0_8] : memref<32x256xf32, #tpu.memory_space<vmem>>, vector<32x256xf32>
    %cst_9 = arith.constant dense<0.000000e+00> : vector<8x256xf32>
    %18 = tpu.matmul %16, %17, %cst_9 {dimension_numbers = #tpu.dot_dimension_numbers<[1], [0], [0], [1], [0, 0, 1, 1], [], []>} : vector<8x32xf32>, vector<32x256xf32>, vector<8x256xf32> -> vector<8x256xf32>
    %c0_10 = arith.constant 0 : index
    %c0_11 = arith.constant 0 : index
    %19 = vector.load %arg5[%c0_10, %c0_11] : memref<1x256xf32, #tpu.memory_space<vmem>>, vector<1x256xf32>
    %20 = vector.broadcast %19 : vector<1x256xf32> to vector<8x256xf32>
    %21 = arith.addf %18, %20 : vector<8x256xf32>
    %cst_12 = arith.constant 0.000000e+00 : f32
    %22 = vector.broadcast %cst_12 : f32 to vector<8x256xf32>
    %23 = arith.cmpf ogt, %21, %22 : vector<8x256xf32>
    %cst_13 = arith.constant 0.00999999977 : f32
    %24 = vector.broadcast %cst_13 : f32 to vector<8x256xf32>
    %25 = arith.mulf %24, %21 : vector<8x256xf32>
    %26 = arith.select %23, %21, %25 : vector<8x256xi1>, vector<8x256xf32>
    %c0_14 = arith.constant 0 : index
    %c0_15 = arith.constant 0 : index
    %27 = vector.load %arg6[%c0_14, %c0_15] : memref<256x128xf32, #tpu.memory_space<vmem>>, vector<256x128xf32>
    %cst_16 = arith.constant dense<0.000000e+00> : vector<8x128xf32>
    %28 = tpu.matmul %26, %27, %cst_16 {dimension_numbers = #tpu.dot_dimension_numbers<[1], [0], [0], [1], [0, 0, 1, 1], [], []>} : vector<8x256xf32>, vector<256x128xf32>, vector<8x128xf32> -> vector<8x128xf32>
    %c0_17 = arith.constant 0 : index
    %c0_18 = arith.constant 0 : index
    %29 = vector.load %arg7[%c0_17, %c0_18] : memref<1x128xf32, #tpu.memory_space<vmem>>, vector<1x128xf32>
    %30 = vector.broadcast %29 : vector<1x128xf32> to vector<8x128xf32>
    %31 = arith.addf %28, %30 : vector<8x128xf32>
    %cst_19 = arith.constant 0.000000e+00 : f32
    %32 = vector.broadcast %cst_19 : f32 to vector<8x128xf32>
    %33 = arith.cmpf ogt, %31, %32 : vector<8x128xf32>
    %cst_20 = arith.constant 0.00999999977 : f32
    %34 = vector.broadcast %cst_20 : f32 to vector<8x128xf32>
    %35 = arith.mulf %34, %31 : vector<8x128xf32>
    %36 = arith.select %33, %31, %35 : vector<8x128xi1>, vector<8x128xf32>
    %c0_21 = arith.constant 0 : index
    %c0_22 = arith.constant 0 : index
    %37 = vector.load %arg8[%c0_21, %c0_22] : memref<128x64xf32, #tpu.memory_space<vmem>>, vector<128x64xf32>
    %cst_23 = arith.constant dense<0.000000e+00> : vector<8x64xf32>
    %38 = tpu.matmul %36, %37, %cst_23 {dimension_numbers = #tpu.dot_dimension_numbers<[1], [0], [0], [1], [0, 0, 1, 1], [], []>} : vector<8x128xf32>, vector<128x64xf32>, vector<8x64xf32> -> vector<8x64xf32>
    %c0_24 = arith.constant 0 : index
    %c0_25 = arith.constant 0 : index
    %39 = vector.load %arg9[%c0_24, %c0_25] : memref<1x64xf32, #tpu.memory_space<vmem>>, vector<1x64xf32>
    %40 = vector.broadcast %39 : vector<1x64xf32> to vector<8x64xf32>
    %41 = arith.addf %38, %40 : vector<8x64xf32>
    %cst_26 = arith.constant 0.000000e+00 : f32
    %42 = vector.broadcast %cst_26 : f32 to vector<8x64xf32>
    %43 = arith.cmpf ogt, %41, %42 : vector<8x64xf32>
    %cst_27 = arith.constant 0.00999999977 : f32
    %44 = vector.broadcast %cst_27 : f32 to vector<8x64xf32>
    %45 = arith.mulf %44, %41 : vector<8x64xf32>
    %46 = arith.select %43, %41, %45 : vector<8x64xi1>, vector<8x64xf32>
    %c0_28 = arith.constant 0 : index
    %c0_29 = arith.constant 0 : index
    %47 = vector.load %arg10[%c0_28, %c0_29] : memref<1x64xf32, #tpu.memory_space<vmem>>, vector<1x64xf32>
    %48 = vector.broadcast %47 : vector<1x64xf32> to vector<8x64xf32>
    %49 = arith.mulf %46, %48 : vector<8x64xf32>
    %cst_30 = arith.constant dense<0.000000e+00> : vector<8xf32>
    %50 = vector.multi_reduction <add>, %49, %cst_30 [1] : vector<8x64xf32> to vector<8xf32>
    %51 = vector.shape_cast %50 : vector<8xf32> to vector<8x1xf32>
    %c0_31 = arith.constant 0 : index
    %c0_32 = arith.constant 0 : index
    %52 = vector.load %arg11[%c0_31, %c0_32] : memref<1x1xf32, #tpu.memory_space<vmem>>, vector<1x1xf32>
    %53 = vector.broadcast %52 : vector<1x1xf32> to vector<8x1xf32>
    %54 = arith.addf %51, %53 : vector<8x1xf32>
    %c0_33 = arith.constant 0 : index
    %c0_34 = arith.constant 0 : index
    %55 = vector.load %arg12[%c0_33, %c0_34] : memref<8x128xf32, #tpu.memory_space<vmem>>, vector<8x32xf32>
    tpu.vector_store %arg12[%c0_33, %c0_34], %15 {strides = array<i32>} : memref<8x128xf32, #tpu.memory_space<vmem>>, vector<8x32xf32>,
    %c0_35 = arith.constant 0 : index
    %c32 = arith.constant 32 : index
    %56 = vector.load %arg12[%c0_35, %c32] : memref<8x128xf32, #tpu.memory_space<vmem>>, vector<8x1xf32>
    tpu.vector_store %arg12[%c0_35, %c32], %54 {strides = array<i32>} : memref<8x128xf32, #tpu.memory_space<vmem>>, vector<8x1xf32>,
    return
  }
  func.func @transform_0(%arg0: i32) -> (i32, i32) {
    %c0_i32 = arith.constant 0 : i32
    %c0_i32_0 = arith.constant 0 : i32
    return %arg0, %c0_i32 : i32, i32
  }
  func.func @transform_1(%arg0: i32) -> (i32, i32) {
    %c0_i32 = arith.constant 0 : i32
    %c0_i32_0 = arith.constant 0 : i32
    %c0_i32_1 = arith.constant 0 : i32
    return %c0_i32, %c0_i32_0 : i32, i32
  }
  func.func @transform_2(%arg0: i32) -> (i32, i32) {
    %c0_i32 = arith.constant 0 : i32
    %c0_i32_0 = arith.constant 0 : i32
    %c0_i32_1 = arith.constant 0 : i32
    return %c0_i32, %c0_i32_0 : i32, i32
  }
  func.func @transform_3(%arg0: i32) -> (i32, i32) {
    %c0_i32 = arith.constant 0 : i32
    %c0_i32_0 = arith.constant 0 : i32
    %c0_i32_1 = arith.constant 0 : i32
    return %c0_i32, %c0_i32_0 : i32, i32
  }
  func.func @transform_4(%arg0: i32) -> (i32, i32) {
    %c0_i32 = arith.constant 0 : i32
    %c0_i32_0 = arith.constant 0 : i32
    %c0_i32_1 = arith.constant 0 : i32
    return %c0_i32, %c0_i32_0 : i32, i32
  }
  func.func @transform_5(%arg0: i32) -> (i32, i32) {
    %c0_i32 = arith.constant 0 : i32
    %c0_i32_0 = arith.constant 0 : i32
    %c0_i32_1 = arith.constant 0 : i32
    return %c0_i32, %c0_i32_0 : i32, i32
  }
  func.func @transform_6(%arg0: i32) -> (i32, i32) {
    %c0_i32 = arith.constant 0 : i32
    %c0_i32_0 = arith.constant 0 : i32
    %c0_i32_1 = arith.constant 0 : i32
    return %c0_i32, %c0_i32_0 : i32, i32
  }
  func.func @transform_7(%arg0: i32) -> (i32, i32) {
    %c0_i32 = arith.constant 0 : i32
    %c0_i32_0 = arith.constant 0 : i32
    %c0_i32_1 = arith.constant 0 : i32
    return %c0_i32, %c0_i32_0 : i32, i32
  }
  func.func @transform_8(%arg0: i32) -> (i32, i32) {
    %c0_i32 = arith.constant 0 : i32
    %c0_i32_0 = arith.constant 0 : i32
    %c0_i32_1 = arith.constant 0 : i32
    return %c0_i32, %c0_i32_0 : i32, i32
  }
  func.func @transform_9(%arg0: i32) -> (i32, i32) {
    %c0_i32 = arith.constant 0 : i32
    %c0_i32_0 = arith.constant 0 : i32
    %c0_i32_1 = arith.constant 0 : i32
    return %c0_i32, %c0_i32_0 : i32, i32
  }
  func.func @transform_10(%arg0: i32) -> (i32, i32) {
    %c0_i32 = arith.constant 0 : i32
    %c0_i32_0 = arith.constant 0 : i32
    %c0_i32_1 = arith.constant 0 : i32
    return %c0_i32, %c0_i32_0 : i32, i32
  }
  func.func @transform_11(%arg0: i32) -> (i32, i32) {
    %c0_i32 = arith.constant 0 : i32
    %c0_i32_0 = arith.constant 0 : i32
    return %arg0, %c0_i32 : i32, i32
  }
}

</mosaic_0001>

<llo_original>
// kernel: tpu_custom_call.1
$region0: #{tpu_custom_call.1}
  #allocation0 [shape = 'u32[]', space=smem, size = 0x4, offset = 0x4, fixed_abs, tag = 'smem constant byte address 0x4 - core index']
  #allocation1 [shape = 'u32[144,128]{1,0:T(1,128)}', space=vmem, size = 0x12000, scoped, tag = 'internal scratch']
  #allocation2 [shape = 'f32[1,1]{1,0:T(1,128)S(1)}', space=vmem, size = 0x200, scoped, tag = 'scoped memory for tpu_custom_call.1']
  %s0 = inlined_call_operand.vmem [shape: f32[8,32], index: 0, kind: input, shape index: {}]
  %s1 = inlined_call_operand.vmem [shape: f32[32,32], index: 1, kind: input, shape index: {}]
  %s2 = inlined_call_operand.vmem [shape: f32[1,32], index: 2, kind: input, shape index: {}]
  %s3 = inlined_call_operand.vmem [shape: f32[32,256], index: 3, kind: input, shape index: {}]
  %s4 = inlined_call_operand.vmem [shape: f32[1,256], index: 4, kind: input, shape index: {}]
  %s5 = inlined_call_operand.hbm [shape: f32[256,128], index: 5, kind: input, shape index: {}]
  %s6 = inlined_call_operand.vmem [shape: f32[1,128], index: 6, kind: input, shape index: {}]
  %s7 = inlined_call_operand.vmem [shape: f32[128,64], index: 7, kind: input, shape index: {}]
  %s8 = inlined_call_operand.vmem [shape: f32[1,64], index: 8, kind: input, shape index: {}]
  %s9 = inlined_call_operand.vmem [shape: f32[1,64], index: 9, kind: input, shape index: {}]
  %s10 = inlined_call_operand.<no memory space> [shape: f32[1,1], index: 10, kind: input, shape index: {}]
  %s11 = inlined_call_operand.hbm [shape: f32[8,128], index: 11, kind: output, shape index: {}]
  %s12 = sld [smem:[#allocation0]]
  $region58: #{tpu_custom_call.1} parent=0
    _
  %s14 = ssub.s32 1, %s12
  %s15 = scalar_select 0, %s14, %s12
  %v16 = vstv %s10
  %17 = vst [vmem:[#allocation2] sm:$0x1] %v16
  $region1: #{tpu_custom_call.1} parent=0
    #allocation3 [shape = 'u8[131072]{0}', space=vmem, size = 0x20000, scoped, tag = 'input window, operand 5, single buffered']
    #allocation4 [shape = 's32[1]{0}', space=sflag, size = 0x4, scoped, tag = 'scoped memory for tpu_custom_call.1']
    #allocation5 [shape = 's32[1]{0}', space=sflag, size = 0x4, scoped, tag = 'scoped memory for tpu_custom_call.1']
    #allocation6 [shape = 'u8[4096]{0}', space=vmem, size = 0x1000, scoped, tag = 'output window, operand 0, single buffered']
    %18 = vsyncpa [#allocation4], 0
    %19 = vsyncpa [#allocation5], 0
    // Predicated region
    $region2: #{tpu_custom_call.1} parent=1 // pred_check
      _
    $region3: #{tpu_custom_call.1} parent=1 // pred_check_branch
      %21 = sbr.rel (0) target = $region5
    $region4: #{tpu_custom_call.1} parent=1 // pred_region
      _
    $region5: #{tpu_custom_call.1} parent=1 // pred_fallthru
      _
    // Predicated region
    $region6: #{tpu_custom_call.1} parent=1 // pred_check
      _
    $region7: #{tpu_custom_call.1} parent=1 // pred_check_branch
      %23 = sbr.rel (0) target = $region9
    $region8: #{tpu_custom_call.1} parent=1 // pred_region
      _
    $region9: #{tpu_custom_call.1} parent=1 // pred_fallthru
      _
    // Predicated region
    $region10: #{tpu_custom_call.1} parent=1 // pred_check
      _
    $region11: #{tpu_custom_call.1} parent=1 // pred_check_branch
      %25 = sbr.rel (0) target = $region13
    $region12: #{tpu_custom_call.1} parent=1 // pred_region
      _
    $region13: #{tpu_custom_call.1} parent=1 // pred_fallthru
      _
    // Predicated region
    $region14: #{tpu_custom_call.1} parent=1 // pred_check
      _
    $region15: #{tpu_custom_call.1} parent=1 // pred_check_branch
      %27 = sbr.rel (0) target = $region17
    $region16: #{tpu_custom_call.1} parent=1 // pred_region
      _
    $region17: #{tpu_custom_call.1} parent=1 // pred_fallthru
      _
    // Predicated region
    $region18: #{tpu_custom_call.1} parent=1 // pred_check
      _
    $region19: #{tpu_custom_call.1} parent=1 // pred_check_branch
      %29 = sbr.rel (0) target = $region21
    $region20: #{tpu_custom_call.1} parent=1 // pred_region
      _
    $region21: #{tpu_custom_call.1} parent=1 // pred_fallthru
      _
    // Predicated region
    $region22: #{tpu_custom_call.1} parent=1 // pred_check
      _
    $region23: #{tpu_custom_call.1} parent=1 // pred_check_branch
      %31 = sbr.rel (0) target = $region25
    $region24: #{tpu_custom_call.1} parent=1 // pred_region
      %s33 = ssub.s32 4096, 4096
      %34 = vsyncadd [#allocation4], %s33
      %s35 = sshll.u32 [#allocation3], 4
      %s36 = int_to_ptr.vmem [resolvable:$true] %s35
      %41 = dma.hbm_to_vmem [thread:$0]  %s5, 4096, %s36, [#allocation4], 128, 128, 8
    $region25: #{tpu_custom_call.1} parent=1 // pred_fallthru
      _
    // Predicated region
    $region26: #{tpu_custom_call.1} parent=1 // pred_check
      _
    $region27: #{tpu_custom_call.1} parent=1 // pred_check_branch
      %43 = sbr.rel (0) target = $region29
    $region28: #{tpu_custom_call.1} parent=1 // pred_region
      _
    $region29: #{tpu_custom_call.1} parent=1 // pred_fallthru
      _
    // Predicated region
    $region30: #{tpu_custom_call.1} parent=1 // pred_check
      _
    $region31: #{tpu_custom_call.1} parent=1 // pred_check_branch
      %45 = sbr.rel (0) target = $region33
    $region32: #{tpu_custom_call.1} parent=1 // pred_region
      _
    $region33: #{tpu_custom_call.1} parent=1 // pred_fallthru
      _
    // Predicated region
    $region34: #{tpu_custom_call.1} parent=1 // pred_check
      _
    $region35: #{tpu_custom_call.1} parent=1 // pred_check_branch
      %47 = sbr.rel (0) target = $region37
    $region36: #{tpu_custom_call.1} parent=1 // pred_region
      _
    $region37: #{tpu_custom_call.1} parent=1 // pred_fallthru
      _
    // Predicated region
    $region38: #{tpu_custom_call.1} parent=1 // pred_check
      _
    $region39: #{tpu_custom_call.1} parent=1 // pred_check_branch
      %49 = sbr.rel (0) target = $region41
    $region40: #{tpu_custom_call.1} parent=1 // pred_region
      _
    $region41: #{tpu_custom_call.1} parent=1 // pred_fallthru
      _
    // Predicated region
    $region42: #{tpu_custom_call.1} parent=1 // pred_check
      _
    $region43: #{tpu_custom_call.1} parent=1 // pred_check_branch
      %51 = sbr.rel (0) target = $region45
    $region44: #{tpu_custom_call.1} parent=1 // pred_region
      _
    $region45: #{tpu_custom_call.1} parent=1 // pred_fallthru
      _
    // Predicated region
    $region46: #{tpu_custom_call.1} parent=1 // pred_check
      _
    $region47: #{tpu_custom_call.1} parent=1 // pred_check_branch
      %53 = sbr.rel (0) target = $region49
    $region48: #{tpu_custom_call.1} parent=1 // pred_region
      %54 = dma.done [#allocation4], 4096
    $region49: #{tpu_custom_call.1} parent=1 // pred_fallthru
      _
    %v55 = vld [vmem:[%s0] sm:$0xff]
    %v56 = vld [vmem:[%s1] sm:$0xff]
    %v57 = vld [vmem:[%s1 + $0x8] sm:$0xff]
    %v58 = vld [vmem:[%s1 + $0x10] sm:$0xff]
    %v59 = vld [vmem:[%s1 + $0x18] sm:$0xff]
    %v60 = vld [vmem:[%s2] sm:$0x1]
    %v62 = vlaneseq
    %v63 = vshrl.u32 %v62, 7
    %v64 = vsub.s32 0, %v63
    %v65 = vrot.slane %v60, %v64
    %vm67 = vcmask 261120
    %v69 = vsel %vm67, %v55, 0
    %71 = vmatprep.subr.mxu0 0.0
    %72 = vmatpush1.msra.mxu0 %v56
    %73 = vmatprep.subr.mxu0 0.0
    %74 = vmatpush1.msra.mxu0 %v57
    %75 = vmatprep.subr.mxu0 0.0
    %76 = vmatpush1.msra.mxu0 %v58
    %77 = vmatprep.subr.mxu0 0.0
    %78 = vmatpush1.msra.mxu0 %v59
    %79 = vmatprep.subr.mxu0 0.0
    %80 = vmatpush1.msra.mxu0 0.0
    %81 = vmatprep.subr.mxu0 0.0
    %82 = vmatpush1.msra.mxu0 0.0
    %83 = vmatprep.subr.mxu0 0.0
    %84 = vmatpush1.msra.mxu0 0.0
    %85 = vmatprep.subr.mxu0 0.0
    %86 = vmatpush1.msra.mxu0 0.0
    %87 = vmatprep.subr.mxu0 0.0
    %88 = vmatpush1.msra.mxu0 0.0
    %89 = vmatprep.subr.mxu0 0.0
    %90 = vmatpush1.msra.mxu0 0.0
    %91 = vmatprep.subr.mxu0 0.0
    %92 = vmatpush1.msra.mxu0 0.0
    %93 = vmatprep.subr.mxu0 0.0
    %94 = vmatpush1.msra.mxu0 0.0
    %95 = vmatprep.subr.mxu0 0.0
    %96 = vmatpush1.msra.mxu0 0.0
    %97 = vmatprep.subr.mxu0 0.0
    %98 = vmatpush1.msra.mxu0 0.0
    %99 = vmatprep.subr.mxu0 0.0
    %100 = vmatpush1.msra.mxu0 0.0
    %101 = vmatprep.subr.mxu0 0.0
    %102 = vmatpush1.msra.mxu0 0.0
    %103 = vmatprep.subr.mxu0 0.0
    %104 = vmatpush1.msra.mxu0 0.0
    %105 = vmatprep.subr.mxu0 0.0
    %106 = vmatpush1.msra.mxu0 0.0
    %107 = vmatprep.subr.mxu0 0.0
    %108 = vmatpush1.msra.mxu0 0.0
    %109 = vmatprep.subr.mxu0 0.0
    %110 = vmatpush1.msra.mxu0 0.0
    %111 = vmatprep.subr.mxu0 0.0
    %112 = vmatpush1.msra.mxu0 0.0
    %113 = vmatprep.subr.mxu0 0.0
    %114 = vmatpush1.msra.mxu0 0.0
    %115 = vmatprep.subr.mxu0 0.0
    %116 = vmatpush1.msra.mxu0 0.0
    %117 = vmatprep.subr.mxu0 0.0
    %118 = vmatpush1.msra.mxu0 0.0
    %119 = vmatprep.subr.mxu0 0.0
    %120 = vmatpush1.msra.mxu0 0.0
    %121 = vmatprep.subr.mxu0 0.0
    %122 = vmatpush1.msra.mxu0 0.0
    %123 = vmatprep.subr.mxu0 0.0
    %124 = vmatpush1.msra.mxu0 0.0
    %125 = vmatprep.subr.mxu0 0.0
    %126 = vmatpush1.msra.mxu0 0.0
    %127 = vmatprep.subr.mxu0 0.0
    %128 = vmatpush1.msra.mxu0 0.0
    %129 = vmatprep.subr.mxu0 0.0
    %130 = vmatpush1.msra.mxu0 0.0
    %131 = vmatprep.subr.mxu0 0.0
    %132 = vmatpush1.msra.mxu0 0.0
    %133 = vmatprep.subr.mxu0 0.0
    %134 = vmatpush1.msra.mxu0 0.0
    %135 = vmatprep.mubr.f32.mxu0 0.0
    %136 = vmatmul.mubr.f32.gmra.mrb[0].mxu0 %v69
    %v137 = vpop.f32.mrb[0].mxu0
    %v138 = vadd.f32 %v65, %v137
    %v139 = vpop.f32.mrb[0].mxu0
    %140 = vdwg.mxu0
    %v141 = vsel %vm67, %v138, -inf
    %142 = vmax.xlane.f32.xlu0 %v141
    %v143 = vpop.xlane.xlu0 %142
    %v144 = vsub.f32 %v138, %v143
    %v145 = vmul.f32 %v144, 1.442695
    %v146 = vpow.pop %v145
    %v147 = vsel %vm67, %v146, 0.0
    %148 = vadd.xlane.f32.xlu0 %v147
    %v149 = vpop.xlane.xlu0 %148
    %v150 = vrcp.pop %v149
    %v151 = vmul.f32 %v146, %v150
    %v152 = vmul.f32 %v55, %v151
    %v153 = vld [vmem:[%s3] sm:$0xff]
    %v154 = vld [vmem:[%s3 + $0x8] sm:$0xff]
    %v155 = vld [vmem:[%s3 + $0x10] sm:$0xff]
    %v156 = vld [vmem:[%s3 + $0x18] sm:$0xff]
    %v157 = vld [vmem:[%s3 + $0x20] sm:$0xff]
    %v158 = vld [vmem:[%s3 + $0x28] sm:$0xff]
    %v159 = vld [vmem:[%s3 + $0x30] sm:$0xff]
    %v160 = vld [vmem:[%s3 + $0x38] sm:$0xff]
    %v161 = vld [vmem:[%s4] sm:$0x3]
    %v163 = vlaneseq
    %v164 = vshrl.u32 %v163, 7
    %v165 = vsub.s32 0, %v164
    %v166 = vrot.slane %v161, %v165
    %v167 = vlaneseq
    %v168 = vshrl.u32 %v167, 7
    %v169 = vsub.s32 1, %v168
    %v170 = vrot.slane %v161, %v169
    %v174 = vsel %vm67, %v152, 0
    %176 = vmatprep.subr.mxu0 %v154
    %177 = vmatpush1.msra.mxu0 %v153
    %178 = vmatprep.subr.mxu0 %v156
    %179 = vmatpush1.msra.mxu0 %v155
    %180 = vmatprep.subr.mxu0 %v158
    %181 = vmatpush1.msra.mxu0 %v157
    %182 = vmatprep.subr.mxu0 %v160
    %183 = vmatpush1.msra.mxu0 %v159
    %184 = vmatprep.subr.mxu0 0.0
    %185 = vmatpush1.msra.mxu0 0.0
    %186 = vmatprep.subr.mxu0 0.0
    %187 = vmatpush1.msra.mxu0 0.0
    %188 = vmatprep.subr.mxu0 0.0
    %189 = vmatpush1.msra.mxu0 0.0
    %190 = vmatprep.subr.mxu0 0.0
    %191 = vmatpush1.msra.mxu0 0.0
    %192 = vmatprep.subr.mxu0 0.0
    %193 = vmatpush1.msra.mxu0 0.0
    %194 = vmatprep.subr.mxu0 0.0
    %195 = vmatpush1.msra.mxu0 0.0
    %196 = vmatprep.subr.mxu0 0.0
    %197 = vmatpush1.msra.mxu0 0.0
    %198 = vmatprep.subr.mxu0 0.0
    %199 = vmatpush1.msra.mxu0 0.0
    %200 = vmatprep.subr.mxu0 0.0
    %201 = vmatpush1.msra.mxu0 0.0
    %202 = vmatprep.subr.mxu0 0.0
    %203 = vmatpush1.msra.mxu0 0.0
    %204 = vmatprep.subr.mxu0 0.0
    %205 = vmatpush1.msra.mxu0 0.0
    %206 = vmatprep.subr.mxu0 0.0
    %207 = vmatpush1.msra.mxu0 0.0
    %208 = vmatprep.subr.mxu0 0.0
    %209 = vmatpush1.msra.mxu0 0.0
    %210 = vmatprep.subr.mxu0 0.0
    %211 = vmatpush1.msra.mxu0 0.0
    %212 = vmatprep.subr.mxu0 0.0
    %213 = vmatpush1.msra.mxu0 0.0
    %214 = vmatprep.subr.mxu0 0.0
    %215 = vmatpush1.msra.mxu0 0.0
    %216 = vmatprep.subr.mxu0 0.0
    %217 = vmatpush1.msra.mxu0 0.0
    %218 = vmatprep.subr.mxu0 0.0
    %219 = vmatpush1.msra.mxu0 0.0
    %220 = vmatprep.subr.mxu0 0.0
    %221 = vmatpush1.msra.mxu0 0.0
    %222 = vmatprep.subr.mxu0 0.0
    %223 = vmatpush1.msra.mxu0 0.0
    %224 = vmatprep.subr.mxu0 0.0
    %225 = vmatpush1.msra.mxu0 0.0
    %226 = vmatprep.subr.mxu0 0.0
    %227 = vmatpush1.msra.mxu0 0.0
    %228 = vmatprep.subr.mxu0 0.0
    %229 = vmatpush1.msra.mxu0 0.0
    %230 = vmatprep.subr.mxu0 0.0
    %231 = vmatpush1.msra.mxu0 0.0
    %232 = vmatprep.subr.mxu0 0.0
    %233 = vmatpush1.msra.mxu0 0.0
    %234 = vmatprep.subr.mxu0 0.0
    %235 = vmatpush1.msra.mxu0 0.0
    %236 = vmatprep.subr.mxu0 0.0
    %237 = vmatpush1.msra.mxu0 0.0
    %238 = vmatprep.subr.mxu0 0.0
    %239 = vmatpush1.msra.mxu0 0.0
    %240 = vmatprep.mubr.f32.mxu0 0.0
    %241 = vmatmul.mubr.f32.gmra.mrb[0].mxu0 %v174
    %v242 = vpop.f32.mrb[0].mxu0
    %v243 = vadd.f32 %v166, %v242
    %v244 = vpop.f32.mrb[0].mxu0
    %v245 = vadd.f32 %v170, %v244
    %246 = vdwg.mxu0
    %vm247 = vcmp.gt.f32.partialorder %v243, 0.0
    %vm248 = vcmp.gt.f32.partialorder %v245, 0.0
    %v249 = vmul.f32 %v243, 0.01
    %v250 = vmul.f32 %v245, 0.01
    %v251 = vsel %vm247, %v243, %v249
    %v252 = vsel %vm248, %v245, %v250
    %v253 = vld [vmem:[#allocation3] sm:$0xff]
    %v254 = vld [vmem:[#allocation3 + $0x8] sm:$0xff]
    %v255 = vld [vmem:[#allocation3 + $0x10] sm:$0xff]
    %v256 = vld [vmem:[#allocation3 + $0x18] sm:$0xff]
    %v257 = vld [vmem:[#allocation3 + $0x20] sm:$0xff]
    %v258 = vld [vmem:[#allocation3 + $0x28] sm:$0xff]
    %v259 = vld [vmem:[#allocation3 + $0x30] sm:$0xff]
    %v260 = vld [vmem:[#allocation3 + $0x38] sm:$0xff]
    %v261 = vld [vmem:[#allocation3 + $0x40] sm:$0xff]
    %v262 = vld [vmem:[#allocation3 + $0x48] sm:$0xff]
    %v263 = vld [vmem:[#allocation3 + $0x50] sm:$0xff]
    %v264 = vld [vmem:[#allocation3 + $0x58] sm:$0xff]
    %v265 = vld [vmem:[#allocation3 + $0x60] sm:$0xff]
    %v266 = vld [vmem:[#allocation3 + $0x68] sm:$0xff]
    %v267 = vld [vmem:[#allocation3 + $0x70] sm:$0xff]
    %v268 = vld [vmem:[#allocation3 + $0x78] sm:$0xff]
    %v269 = vld [vmem:[#allocation3 + $0x80] sm:$0xff]
    %v270 = vld [vmem:[#allocation3 + $0x88] sm:$0xff]
    %v271 = vld [vmem:[#allocation3 + $0x90] sm:$0xff]
    %v272 = vld [vmem:[#allocation3 + $0x98] sm:$0xff]
    %v273 = vld [vmem:[#allocation3 + $0xa0] sm:$0xff]
    %v274 = vld [vmem:[#allocation3 + $0xa8] sm:$0xff]
    %v275 = vld [vmem:[#allocation3 + $0xb0] sm:$0xff]
    %v276 = vld [vmem:[#allocation3 + $0xb8] sm:$0xff]
    %v277 = vld [vmem:[#allocation3 + $0xc0] sm:$0xff]
    %v278 = vld [vmem:[#allocation3 + $0xc8] sm:$0xff]
    %v279 = vld [vmem:[#allocation3 + $0xd0] sm:$0xff]
    %v280 = vld [vmem:[#allocation3 + $0xd8] sm:$0xff]
    %v281 = vld [vmem:[#allocation3 + $0xe0] sm:$0xff]
    %v282 = vld [vmem:[#allocation3 + $0xe8] sm:$0xff]
    %v283 = vld [vmem:[#allocation3 + $0xf0] sm:$0xff]
    %v284 = vld [vmem:[#allocation3 + $0xf8] sm:$0xff]
    %v285 = vld [vmem:[%s6] sm:$0x1]
    %v287 = vlaneseq
    %v288 = vshrl.u32 %v287, 7
    %v289 = vsub.s32 0, %v288
    %v290 = vrot.slane %v285, %v289
    %292 = vmatprep.subr.mxu0 0.0
    %293 = vmatpush1.msra.mxu0 %v253
    %294 = vmatprep.subr.mxu0 0.0
    %295 = vmatpush1.msra.mxu0 %v254
    %296 = vmatprep.subr.mxu0 0.0
    %297 = vmatpush1.msra.mxu0 %v255
    %298 = vmatprep.subr.mxu0 0.0
    %299 = vmatpush1.msra.mxu0 %v256
    %300 = vmatprep.subr.mxu0 0.0
    %301 = vmatpush1.msra.mxu0 %v257
    %302 = vmatprep.subr.mxu0 0.0
    %303 = vmatpush1.msra.mxu0 %v258
    %304 = vmatprep.subr.mxu0 0.0
    %305 = vmatpush1.msra.mxu0 %v259
    %306 = vmatprep.subr.mxu0 0.0
    %307 = vmatpush1.msra.mxu0 %v260
    %308 = vmatprep.subr.mxu0 0.0
    %309 = vmatpush1.msra.mxu0 %v261
    %310 = vmatprep.subr.mxu0 0.0
    %311 = vmatpush1.msra.mxu0 %v262
    %312 = vmatprep.subr.mxu0 0.0
    %313 = vmatpush1.msra.mxu0 %v263
    %314 = vmatprep.subr.mxu0 0.0
    %315 = vmatpush1.msra.mxu0 %v264
    %316 = vmatprep.subr.mxu0 0.0
    %317 = vmatpush1.msra.mxu0 %v265
    %318 = vmatprep.subr.mxu0 0.0
    %319 = vmatpush1.msra.mxu0 %v266
    %320 = vmatprep.subr.mxu0 0.0
    %321 = vmatpush1.msra.mxu0 %v267
    %322 = vmatprep.subr.mxu0 0.0
    %323 = vmatpush1.msra.mxu0 %v268
    %324 = vmatprep.subr.mxu0 0.0
    %325 = vmatpush1.msra.mxu0 %v269
    %326 = vmatprep.subr.mxu0 0.0
    %327 = vmatpush1.msra.mxu0 %v270
    %328 = vmatprep.subr.mxu0 0.0
    %329 = vmatpush1.msra.mxu0 %v271
    %330 = vmatprep.subr.mxu0 0.0
    %331 = vmatpush1.msra.mxu0 %v272
    %332 = vmatprep.subr.mxu0 0.0
    %333 = vmatpush1.msra.mxu0 %v273
    %334 = vmatprep.subr.mxu0 0.0
    %335 = vmatpush1.msra.mxu0 %v274
    %336 = vmatprep.subr.mxu0 0.0
    %337 = vmatpush1.msra.mxu0 %v275
    %338 = vmatprep.subr.mxu0 0.0
    %339 = vmatpush1.msra.mxu0 %v276
    %340 = vmatprep.subr.mxu0 0.0
    %341 = vmatpush1.msra.mxu0 %v277
    %342 = vmatprep.subr.mxu0 0.0
    %343 = vmatpush1.msra.mxu0 %v278
    %344 = vmatprep.subr.mxu0 0.0
    %345 = vmatpush1.msra.mxu0 %v279
    %346 = vmatprep.subr.mxu0 0.0
    %347 = vmatpush1.msra.mxu0 %v280
    %348 = vmatprep.subr.mxu0 0.0
    %349 = vmatpush1.msra.mxu0 %v281
    %350 = vmatprep.subr.mxu0 0.0
    %351 = vmatpush1.msra.mxu0 %v282
    %352 = vmatprep.subr.mxu0 0.0
    %353 = vmatpush1.msra.mxu0 %v283
    %354 = vmatprep.subr.mxu0 0.0
    %355 = vmatpush1.msra.mxu0 %v284
    %356 = vmatprep.mubr.f32.mxu0 %v252
    %357 = vmatmul.mubr.f32.gmra.mrb[0].mxu0 %v251
    %v358 = vpop.f32.mrb[0].mxu0
    %v359 = vadd.f32 %v290, %v358
    %v360 = vpop.f32.mrb[0].mxu0
    %361 = vdwg.mxu0
    %vm362 = vcmp.gt.f32.partialorder %v359, 0.0
    %v363 = vmul.f32 %v359, 0.01
    %v364 = vsel %vm362, %v359, %v363
    %v365 = vld [vmem:[%s7] sm:$0xff]
    %v366 = vld [vmem:[%s7 + $0x8] sm:$0xff]
    %v367 = vld [vmem:[%s7 + $0x10] sm:$0xff]
    %v368 = vld [vmem:[%s7 + $0x18] sm:$0xff]
    %v369 = vld [vmem:[%s7 + $0x20] sm:$0xff]
    %v370 = vld [vmem:[%s7 + $0x28] sm:$0xff]
    %v371 = vld [vmem:[%s7 + $0x30] sm:$0xff]
    %v372 = vld [vmem:[%s7 + $0x38] sm:$0xff]
    %v373 = vld [vmem:[%s7 + $0x40] sm:$0xff]
    %v374 = vld [vmem:[%s7 + $0x48] sm:$0xff]
    %v375 = vld [vmem:[%s7 + $0x50] sm:$0xff]
    %v376 = vld [vmem:[%s7 + $0x58] sm:$0xff]
    %v377 = vld [vmem:[%s7 + $0x60] sm:$0xff]
    %v378 = vld [vmem:[%s7 + $0x68] sm:$0xff]
    %v379 = vld [vmem:[%s7 + $0x70] sm:$0xff]
    %v380 = vld [vmem:[%s7 + $0x78] sm:$0xff]
    %v381 = vld [vmem:[%s8] sm:$0x1]
    %v383 = vlaneseq
    %v384 = vshrl.u32 %v383, 7
    %v385 = vsub.s32 0, %v384
    %v386 = vrot.slane %v381, %v385
    %388 = vmatprep.subr.mxu0 0.0
    %389 = vmatpush1.msra.mxu0 %v365
    %390 = vmatprep.subr.mxu0 0.0
    %391 = vmatpush1.msra.mxu0 %v366
    %392 = vmatprep.subr.mxu0 0.0
    %393 = vmatpush1.msra.mxu0 %v367
    %394 = vmatprep.subr.mxu0 0.0
    %395 = vmatpush1.msra.mxu0 %v368
    %396 = vmatprep.subr.mxu0 0.0
    %397 = vmatpush1.msra.mxu0 %v369
    %398 = vmatprep.subr.mxu0 0.0
    %399 = vmatpush1.msra.mxu0 %v370
    %400 = vmatprep.subr.mxu0 0.0
    %401 = vmatpush1.msra.mxu0 %v371
    %402 = vmatprep.subr.mxu0 0.0
    %403 = vmatpush1.msra.mxu0 %v372
    %404 = vmatprep.subr.mxu0 0.0
    %405 = vmatpush1.msra.mxu0 %v373
    %406 = vmatprep.subr.mxu0 0.0
    %407 = vmatpush1.msra.mxu0 %v374
    %408 = vmatprep.subr.mxu0 0.0
    %409 = vmatpush1.msra.mxu0 %v375
    %410 = vmatprep.subr.mxu0 0.0
    %411 = vmatpush1.msra.mxu0 %v376
    %412 = vmatprep.subr.mxu0 0.0
    %413 = vmatpush1.msra.mxu0 %v377
    %414 = vmatprep.subr.mxu0 0.0
    %415 = vmatpush1.msra.mxu0 %v378
    %416 = vmatprep.subr.mxu0 0.0
    %417 = vmatpush1.msra.mxu0 %v379
    %418 = vmatprep.subr.mxu0 0.0
    %419 = vmatpush1.msra.mxu0 %v380
    %420 = vmatprep.subr.mxu0 0.0
    %421 = vmatpush1.msra.mxu0 0.0
    %422 = vmatprep.subr.mxu0 0.0
    %423 = vmatpush1.msra.mxu0 0.0
    %424 = vmatprep.subr.mxu0 0.0
    %425 = vmatpush1.msra.mxu0 0.0
    %426 = vmatprep.subr.mxu0 0.0
    %427 = vmatpush1.msra.mxu0 0.0
    %428 = vmatprep.subr.mxu0 0.0
    %429 = vmatpush1.msra.mxu0 0.0
    %430 = vmatprep.subr.mxu0 0.0
    %431 = vmatpush1.msra.mxu0 0.0
    %432 = vmatprep.subr.mxu0 0.0
    %433 = vmatpush1.msra.mxu0 0.0
    %434 = vmatprep.subr.mxu0 0.0
    %435 = vmatpush1.msra.mxu0 0.0
    %436 = vmatprep.subr.mxu0 0.0
    %437 = vmatpush1.msra.mxu0 0.0
    %438 = vmatprep.subr.mxu0 0.0
    %439 = vmatpush1.msra.mxu0 0.0
    %440 = vmatprep.subr.mxu0 0.0
    %441 = vmatpush1.msra.mxu0 0.0
    %442 = vmatprep.subr.mxu0 0.0
    %443 = vmatpush1.msra.mxu0 0.0
    %444 = vmatprep.subr.mxu0 0.0
    %445 = vmatpush1.msra.mxu0 0.0
    %446 = vmatprep.subr.mxu0 0.0
    %447 = vmatpush1.msra.mxu0 0.0
    %448 = vmatprep.subr.mxu0 0.0
    %449 = vmatpush1.msra.mxu0 0.0
    %450 = vmatprep.subr.mxu0 0.0
    %451 = vmatpush1.msra.mxu0 0.0
    %452 = vmatprep.mubr.f32.mxu0 0.0
    %453 = vmatmul.mubr.f32.gmra.mrb[0].mxu0 %v364
    %v454 = vpop.f32.mrb[0].mxu0
    %v455 = vadd.f32 %v386, %v454
    %v456 = vpop.f32.mrb[0].mxu0
    %457 = vdwg.mxu0
    %vm458 = vcmp.gt.f32.partialorder %v455, 0.0
    %v459 = vmul.f32 %v455, 0.01
    %v460 = vsel %vm458, %v455, %v459
    %v461 = vld [vmem:[%s9] sm:$0x1]
    %v463 = vlaneseq
    %v464 = vshrl.u32 %v463, 7
    %v465 = vsub.s32 0, %v464
    %v466 = vrot.slane %v461, %v465
    %v468 = vmul.f32 %v460, %v466
    %vm469 = vcmask 523264
    %v470 = vsel %vm469, %v468, 0.0
    %471 = vadd.xlane.f32.xlu0 %v470
    %v472 = vpop.xlane.xlu0 %471
    %v473 = vld [vmem:[#allocation2] sm:$0x1]
    %v475 = vlaneseq
    %v476 = vshrl.u32 %v475, 7
    %v477 = vsub.s32 0, %v476
    %v478 = vrot.slane %v473, %v477
    %v480 = vadd.f32 %v472, %v478
    %481 = vst.msk [vmem:[#allocation6] sm:$0xff] %vm67, %v151
    %483 = vrot.lane.b32.xlu0 %v480, 32
    %v484 = vpop.permute.xlu0 %483
    %vm486 = vcmask 269568
    %487 = vst.msk [vmem:[#allocation6] sm:$0xff] %vm486, %v484
    // Predicated region
    $region50: #{tpu_custom_call.1} parent=1 // pred_check
      _
    $region51: #{tpu_custom_call.1} parent=1 // pred_check_branch
      %489 = sbr.rel (0) target = $region53
    $region52: #{tpu_custom_call.1} parent=1 // pred_region
      %s491 = ssub.s32 128, 128
      %492 = vsyncadd [#allocation5], %s491
      %s494 = sshll.u32 [#allocation6], 4
      %s495 = int_to_ptr.vmem [resolvable:$true] %s494
      %497 = dma.vmem_to_hbm [thread:$0]  %s495, 128, %s11, [#allocation5]
    $region53: #{tpu_custom_call.1} parent=1 // pred_fallthru
      _
    // Predicated region
    $region54: #{tpu_custom_call.1} parent=1 // pred_check
      _
    $region55: #{tpu_custom_call.1} parent=1 // pred_check_branch
      %499 = sbr.rel (0) target = $region57
    $region56: #{tpu_custom_call.1} parent=1 // pred_region
      %500 = dma.done [#allocation5], 128
    $region57: #{tpu_custom_call.1} parent=1 // pred_fallthru
      _
    %501 = vsyncpa [#allocation4], 1
    %502 = vsyncpa [#allocation5], 1

</llo_original>
